<compile_context>
chip_gen: v7x
topology: tpu7x:2x2x1
jax: 0.10.0
libtpu: 0.0.40
codegen_flags: <defaults>
</compile_context>

<pallas_src>
import math

import jax
import jax.numpy as jnp
from jax.experimental import pallas as pl
from jax.experimental.pallas import tpu as pltpu


def _make_kernel(sublayer_fn, eps: float, n_params: int):
    """Build the fused LayerNorm -> sublayer -> residual kernel."""

    def kernel(x_ref, alpha_ref, bias_ref, *rest):
        param_refs = rest[:n_params]
        out_ref = rest[n_params]

        x = x_ref[...].astype(jnp.float32)                    # (TR, D)
        d = x.shape[-1]

        # LayerNormalization: torch.Tensor.std is unbiased (divide by D-1),
        # and eps is added to std (not variance).
        mean = jnp.mean(x, axis=-1, keepdims=True)
        xc = x - mean
        var = jnp.sum(xc * xc, axis=-1, keepdims=True) * (1.0 / (d - 1))
        std = jnp.sqrt(var)
        xn = alpha_ref[...] * (xc / (std + eps)) + bias_ref[...]

        # sublayer(norm(x)) fused in-kernel (row-wise / position-wise sublayers only).
        y = sublayer_fn(xn, *(r[...] for r in param_refs))

        # ResidualConnection: x = y + dropout(y); dropout is identity in eval mode.
        # TODO(synk): training-mode dropout (random mask + 1/(1-p) scaling) not applied.
        out_ref[...] = (y + y).astype(out_ref.dtype)

    return kernel


def _pick_row_tile(n: int, max_rows: int) -> int:
    # Row tile must be a multiple of 8 (sublane) or equal to the full row count.
    if n <= max_rows:
        return n
    for tr in (512, 256, 128, 64, 32, 16, 8):
        if tr <= max_rows and n % tr == 0:
            return tr
    return n  # fall back to a single (full) block


def residual_connection(x, ln_alpha, ln_bias, sublayer_fn, sublayer_params=(),
                        *, eps: float = 1e-6, max_block_rows: int = 256):
    """Pallas ResidualConnection.forward(x, sublayer) for row-wise sublayers.

    sublayer_fn(xn_block, *param_arrays) must map a (rows, D) block to (rows, D).
    """
    orig_shape = x.shape
    d = orig_shape[-1]
    xf = x.reshape(-1, d)
    n = xf.shape[0]

    tr = _pick_row_tile(n, max_block_rows)
    grid = (n // tr,)

    alpha2 = ln_alpha.reshape(1, d).astype(jnp.float32)
    bias2 = ln_bias.reshape(1, d).astype(jnp.float32)

    row_spec = pl.BlockSpec((tr, d), lambda i: (i, 0))
    vec_spec = pl.BlockSpec((1, d), lambda i: (0, 0))
    param_specs = [
        pl.BlockSpec(p.shape, lambda i, nd=p.ndim: (0,) * nd)
        for p in sublayer_params
    ]

    kernel = _make_kernel(sublayer_fn, eps, len(sublayer_params))

    out = pl.pallas_call(
        kernel,
        out_shape=jax.ShapeDtypeStruct((n, d), x.dtype),
        grid_spec=pltpu.PrefetchScalarGridSpec(
            num_scalar_prefetch=0,
            grid=grid,
            in_specs=[row_spec, vec_spec, vec_spec] + param_specs,
            out_specs=row_spec,
        ),
        compiler_params=pltpu.CompilerParams(
            dimension_semantics=("parallel",)),
    )(xf, alpha2, bias2, *sublayer_params)

    return out.reshape(orig_shape)


def reference_residual(x, alpha, bias, w, b, *, eps=1e-6):
    """Pure-JAX reference matching the PyTorch module (eval mode)."""
    mean = x.mean(-1, keepdims=True)
    std = jnp.std(x, axis=-1, keepdims=True, ddof=1)      # torch unbiased std
    xn = alpha * (x - mean) / (std + eps) + bias
    y = xn @ w.T + b                                      # demo sublayer: Linear
    return y + y                                          # dropout == identity (eval)


if __name__ == "__main__":
    B, S, D = 2, 8, 32
    key = jax.random.PRNGKey(0)
    kx, ka, kb, kw, kb2 = jax.random.split(key, 5)

    x = jax.random.normal(kx, (B, S, D), dtype=jnp.float32)
    # LayerNorm params (module inits to ones/zeros; randomized here to exercise the math).
    alpha = 1.0 + 0.1 * jax.random.normal(ka, (D,), dtype=jnp.float32)
    bias = 0.1 * jax.random.normal(kb, (D,), dtype=jnp.float32)

    # Demo sublayer: position-wise Linear, PyTorch convention W:(out,in), y = x @ W.T + b.
    bound = 1.0 / math.sqrt(D)
    w = jax.random.uniform(kw, (D, D), jnp.float32, -bound, bound)
    b = jax.random.uniform(kb2, (D,), jnp.float32, -bound, bound)

    # Pre-transpose once in the wrapper args so the kernel never does an in-kernel .T.
    wt = w.T
    b_row = b.reshape(1, D)

    def linear_sublayer(xn, wt_blk, b_blk):
        return jnp.dot(xn, wt_blk, preferred_element_type=jnp.float32) + b_blk

    out = residual_connection(x, alpha, bias, linear_sublayer, (wt, b_row), eps=1e-6)
    out = jax.block_until_ready(out)

    ref = reference_residual(x, alpha, bias, w, b, eps=1e-6)
    assert jnp.allclose(out, ref, atol=1e-4, rtol=1e-4), "mismatch vs reference"

    print("KERNEL_OK")
</pallas_src>

<mosaic_0001>
module attributes {stable_mosaic.version = 11 : i64} {
  func.func @kernel(%arg0: i32, %arg1: memref<16x32xf32, #tpu.memory_space<vmem>>, %arg2: memref<1x32xf32, #tpu.memory_space<vmem>>, %arg3: memref<1x32xf32, #tpu.memory_space<vmem>>, %arg4: memref<32x32xf32, #tpu.memory_space<vmem>>, %arg5: memref<1x32xf32, #tpu.memory_space<vmem>>, %arg6: memref<16x32xf32, #tpu.memory_space<vmem>>) attributes {dimension_semantics = [#tpu.dimension_semantics<parallel>], iteration_bounds = array<i64: 1>, scalar_prefetch = 0 : i64, scratch_operands = 0 : i64, tpu.core_type = #tpu.core_type<tc>, window_params = [{transform_indices = @transform_0, window_bounds = array<i64: 16, 32>}, {pipeline_mode = #tpu.pipeline_mode<synchronous>, transform_indices = @transform_1, window_bounds = array<i64: 1, 32>}, {pipeline_mode = #tpu.pipeline_mode<synchronous>, transform_indices = @transform_2, window_bounds = array<i64: 1, 32>}, {pipeline_mode = #tpu.pipeline_mode<synchronous>, transform_indices = @transform_3, window_bounds = array<i64: 32, 32>}, {pipeline_mode = #tpu.pipeline_mode<synchronous>, transform_indices = @transform_4, window_bounds = array<i64: 1, 32>}, {transform_indices = @transform_5, window_bounds = array<i64: 16, 32>}]} {
    %c0 = arith.constant 0 : index
    %c0_0 = arith.constant 0 : index
    %0 = vector.load %arg1[%c0, %c0_0] : memref<16x32xf32, #tpu.memory_space<vmem>>, vector<16x32xf32>
    %cst = arith.constant dense<0.000000e+00> : vector<16xf32>
    %1 = vector.multi_reduction <add>, %0, %cst [1] : vector<16x32xf32> to vector<16xf32>
    %2 = vector.shape_cast %1 : vector<16xf32> to vector<16x1xf32>
    %cst_1 = arith.constant 3.200000e+01 : f32
    %3 = vector.broadcast %cst_1 : f32 to vector<16x1xf32>
    %4 = arith.divf %2, %3 : vector<16x1xf32>
    %5 = vector.broadcast %4 : vector<16x1xf32> to vector<16x32xf32>
    %6 = arith.subf %0, %5 : vector<16x32xf32>
    %7 = arith.mulf %6, %6 : vector<16x32xf32>
    %cst_2 = arith.constant dense<0.000000e+00> : vector<16xf32>
    %8 = vector.multi_reduction <add>, %7, %cst_2 [1] : vector<16x32xf32> to vector<16xf32>
    %9 = vector.shape_cast %8 : vector<16xf32> to vector<16x1xf32>
    %cst_3 = arith.constant 0.0322580636 : f32
    %10 = vector.broadcast %cst_3 : f32 to vector<16x1xf32>
    %11 = arith.mulf %9, %10 : vector<16x1xf32>
    %12 = math.sqrt %11 : vector<16x1xf32>
    %c0_4 = arith.constant 0 : index
    %c0_5 = arith.constant 0 : index
    %13 = vector.load %arg2[%c0_4, %c0_5] : memref<1x32xf32, #tpu.memory_space<vmem>>, vector<1x32xf32>
    %cst_6 = arith.constant 9.99999997E-7 : f32
    %14 = vector.broadcast %cst_6 : f32 to vector<16x1xf32>
    %15 = arith.addf %12, %14 : vector<16x1xf32>
    %16 = vector.broadcast %15 : vector<16x1xf32> to vector<16x32xf32>
    %17 = arith.divf %6, %16 : vector<16x32xf32>
    %18 = vector.broadcast %13 : vector<1x32xf32> to vector<16x32xf32>
    %19 = arith.mulf %18, %17 : vector<16x32xf32>
    %c0_7 = arith.constant 0 : index
    %c0_8 = arith.constant 0 : index
    %20 = vector.load %arg3[%c0_7, %c0_8] : memref<1x32xf32, #tpu.memory_space<vmem>>, vector<1x32xf32>
    %21 = vector.broadcast %20 : vector<1x32xf32> to vector<16x32xf32>
    %22 = arith.addf %19, %21 : vector<16x32xf32>
    %c0_9 = arith.constant 0 : index
    %c0_10 = arith.constant 0 : index
    %23 = vector.load %arg4[%c0_9, %c0_10] : memref<32x32xf32, #tpu.memory_space<vmem>>, vector<32x32xf32>
    %c0_11 = arith.constant 0 : index
    %c0_12 = arith.constant 0 : index
    %24 = vector.load %arg5[%c0_11, %c0_12] : memref<1x32xf32, #tpu.memory_space<vmem>>, vector<1x32xf32>
    %cst_13 = arith.constant dense<0.000000e+00> : vector<16x32xf32>
    %25 = tpu.matmul %22, %23, %cst_13 {dimension_numbers = #tpu.dot_dimension_numbers<[1], [0], [0], [1], [0, 0, 1, 1], [], []>} : vector<16x32xf32>, vector<32x32xf32>, vector<16x32xf32> -> vector<16x32xf32>
    %26 = vector.broadcast %24 : vector<1x32xf32> to vector<16x32xf32>
    %27 = arith.addf %25, %26 : vector<16x32xf32>
    %28 = arith.addf %27, %27 : vector<16x32xf32>
    %c0_14 = arith.constant 0 : index
    %c0_15 = arith.constant 0 : index
    %29 = vector.load %arg6[%c0_14, %c0_15] : memref<16x32xf32, #tpu.memory_space<vmem>>, vector<16x32xf32>
    tpu.vector_store %arg6[%c0_14, %c0_15], %28 {strides = array<i32>} : memref<16x32xf32, #tpu.memory_space<vmem>>, vector<16x32xf32>,
    return
  }
  func.func @transform_0(%arg0: i32) -> (i32, i32) {
    %c0_i32 = arith.constant 0 : i32
    %c0_i32_0 = arith.constant 0 : i32
    return %arg0, %c0_i32 : i32, i32
  }
  func.func @transform_1(%arg0: i32) -> (i32, i32) {
    %c0_i32 = arith.constant 0 : i32
    %c0_i32_0 = arith.constant 0 : i32
    %c0_i32_1 = arith.constant 0 : i32
    return %c0_i32, %c0_i32_0 : i32, i32
  }
  func.func @transform_2(%arg0: i32) -> (i32, i32) {
    %c0_i32 = arith.constant 0 : i32
    %c0_i32_0 = arith.constant 0 : i32
    %c0_i32_1 = arith.constant 0 : i32
    return %c0_i32, %c0_i32_0 : i32, i32
  }
  func.func @transform_3(%arg0: i32) -> (i32, i32) {
    %c0_i32 = arith.constant 0 : i32
    %c0_i32_0 = arith.constant 0 : i32
    %c0_i32_1 = arith.constant 0 : i32
    return %c0_i32, %c0_i32_0 : i32, i32
  }
  func.func @transform_4(%arg0: i32) -> (i32, i32) {
    %c0_i32 = arith.constant 0 : i32
    %c0_i32_0 = arith.constant 0 : i32
    %c0_i32_1 = arith.constant 0 : i32
    return %c0_i32, %c0_i32_0 : i32, i32
  }
  func.func @transform_5(%arg0: i32) -> (i32, i32) {
    %c0_i32 = arith.constant 0 : i32
    %c0_i32_0 = arith.constant 0 : i32
    return %arg0, %c0_i32 : i32, i32
  }
}

</mosaic_0001>

<llo_original>
// kernel: tpu_custom_call.1
$region0: #{tpu_custom_call.1}
  #allocation0 [shape = 'u32[]', space=smem, size = 0x4, offset = 0x4, fixed_abs, tag = 'smem constant byte address 0x4 - core index']
  #allocation1 [shape = 'u32[144,128]{1,0:T(1,128)}', space=vmem, size = 0x12000, scoped, tag = 'internal scratch']
  %s0 = inlined_call_operand.hbm [shape: f32[16,32], index: 0, kind: input, shape index: {}]
  %s1 = inlined_call_operand.vmem [shape: f32[1,32], index: 1, kind: input, shape index: {}]
  %s2 = inlined_call_operand.vmem [shape: f32[1,32], index: 2, kind: input, shape index: {}]
  %s3 = inlined_call_operand.hbm [shape: f32[32,32], index: 3, kind: input, shape index: {}]
  %s4 = inlined_call_operand.vmem [shape: f32[1,32], index: 4, kind: input, shape index: {}]
  %s5 = inlined_call_operand.hbm [shape: f32[16,32], index: 5, kind: output, shape index: {}]
  %s6 = sld [smem:[#allocation0]]
  $region38: #{tpu_custom_call.1} parent=0
    _
  %s8 = ssub.s32 1, %s6
  %s9 = scalar_select 0, %s8, %s6
  $region1: #{tpu_custom_call.1} parent=0
    #allocation2 [shape = 'u8[8192]{0}', space=vmem, size = 0x2000, scoped, tag = 'input window, operand 0, single buffered']
    #allocation3 [shape = 's32[1]{0}', space=sflag, size = 0x4, scoped, tag = 'scoped memory for tpu_custom_call.1']
    #allocation4 [shape = 's32[1]{0}', space=sflag, size = 0x4, scoped, tag = 'scoped memory for tpu_custom_call.1']
    #allocation5 [shape = 'u8[16384]{0}', space=vmem, size = 0x4000, scoped, tag = 'input window, operand 3, single buffered']
    #allocation6 [shape = 's32[1]{0}', space=sflag, size = 0x4, scoped, tag = 'scoped memory for tpu_custom_call.1']
    #allocation7 [shape = 'u8[8192]{0}', space=vmem, size = 0x2000, scoped, tag = 'output window, operand 0, single buffered']
    %10 = vsyncpa [#allocation3], 0
    %11 = vsyncpa [#allocation6], 0
    %12 = vsyncpa [#allocation4], 0
    // Predicated region
    $region2: #{tpu_custom_call.1} parent=1 // pred_check
      _
    $region3: #{tpu_custom_call.1} parent=1 // pred_check_branch
      %14 = sbr.rel (0) target = $region5
    $region4: #{tpu_custom_call.1} parent=1 // pred_region
      %s16 = ssub.s32 256, 256
      %17 = vsyncadd [#allocation3], %s16
      %s18 = sshll.u32 [#allocation2], 4
      %s19 = int_to_ptr.vmem [resolvable:$true] %s18
      %24 = dma.hbm_to_vmem [thread:$0]  %s0, 256, %s19, [#allocation3], 128, 128, 8
    $region5: #{tpu_custom_call.1} parent=1 // pred_fallthru
      _
    // Predicated region
    $region6: #{tpu_custom_call.1} parent=1 // pred_check
      _
    $region7: #{tpu_custom_call.1} parent=1 // pred_check_branch
      %26 = sbr.rel (0) target = $region9
    $region8: #{tpu_custom_call.1} parent=1 // pred_region
      _
    $region9: #{tpu_custom_call.1} parent=1 // pred_fallthru
      _
    // Predicated region
    $region10: #{tpu_custom_call.1} parent=1 // pred_check
      _
    $region11: #{tpu_custom_call.1} parent=1 // pred_check_branch
      %28 = sbr.rel (0) target = $region13
    $region12: #{tpu_custom_call.1} parent=1 // pred_region
      _
    $region13: #{tpu_custom_call.1} parent=1 // pred_fallthru
      _
    // Predicated region
    $region14: #{tpu_custom_call.1} parent=1 // pred_check
      _
    $region15: #{tpu_custom_call.1} parent=1 // pred_check_branch
      %30 = sbr.rel (0) target = $region17
    $region16: #{tpu_custom_call.1} parent=1 // pred_region
      %s32 = ssub.s32 512, 512
      %33 = vsyncadd [#allocation6], %s32
      %s34 = sshll.u32 [#allocation5], 4
      %s35 = int_to_ptr.vmem [resolvable:$true] %s34
      %40 = dma.hbm_to_vmem [thread:$0]  %s3, 512, %s35, [#allocation6], 128, 128, 8
    $region17: #{tpu_custom_call.1} parent=1 // pred_fallthru
      _
    // Predicated region
    $region18: #{tpu_custom_call.1} parent=1 // pred_check
      _
    $region19: #{tpu_custom_call.1} parent=1 // pred_check_branch
      %42 = sbr.rel (0) target = $region21
    $region20: #{tpu_custom_call.1} parent=1 // pred_region
      _
    $region21: #{tpu_custom_call.1} parent=1 // pred_fallthru
      _
    // Predicated region
    $region22: #{tpu_custom_call.1} parent=1 // pred_check
      _
    $region23: #{tpu_custom_call.1} parent=1 // pred_check_branch
      %44 = sbr.rel (0) target = $region25
    $region24: #{tpu_custom_call.1} parent=1 // pred_region
      %45 = dma.done [#allocation3], 256
    $region25: #{tpu_custom_call.1} parent=1 // pred_fallthru
      _
    // Predicated region
    $region26: #{tpu_custom_call.1} parent=1 // pred_check
      _
    $region27: #{tpu_custom_call.1} parent=1 // pred_check_branch
      %47 = sbr.rel (0) target = $region29
    $region28: #{tpu_custom_call.1} parent=1 // pred_region
      %48 = dma.done [#allocation6], 512
    $region29: #{tpu_custom_call.1} parent=1 // pred_fallthru
      _
    %v49 = vld [vmem:[#allocation2] sm:$0xff]
    %v50 = vld [vmem:[#allocation2 + $0x8] sm:$0xff]
    %vm51 = vcmask 261120
    %v52 = vsel %vm51, %v49, 0.0
    %53 = vadd.xlane.f32.xlu0 %v52
    %v54 = vpop.xlane.xlu0 %53
    %v55 = vsel %vm51, %v50, 0.0
    %56 = vadd.xlane.f32.xlu0 %v55
    %v57 = vpop.xlane.xlu0 %56
    %v58 = vrcp.pop 32.0
    %v59 = vmul.f32 %v54, %v58
    %v60 = vmul.f32 %v57, %v58
    %v61 = vsub.f32 %v49, %v59
    %v62 = vsub.f32 %v50, %v60
    %v63 = vmul.f32 %v61, %v61
    %v64 = vmul.f32 %v62, %v62
    %v65 = vsel %vm51, %v63, 0.0
    %66 = vadd.xlane.f32.xlu0 %v65
    %v67 = vpop.xlane.xlu0 %66
    %v68 = vsel %vm51, %v64, 0.0
    %69 = vadd.xlane.f32.xlu0 %v68
    %v70 = vpop.xlane.xlu0 %69
    %v71 = vmul.f32 %v67, 0.032258064
    %v72 = vmul.f32 %v70, 0.032258064
    %v73 = vrsqrt.pop %v71
    %v74 = vmul.f32 %v71, %v73
    %vm75 = vcmp.eq.f32.partialorder %v71, inf
    %v76 = vsel %vm75, %v71, %v74
    %vm77 = vcmp.eq.f32.partialorder %v71, 0.0
    %v78 = vand.u32 %v71, 2147483648
    %v79 = vsel %vm77, %v78, %v76
    %v80 = vrsqrt.pop %v72
    %v81 = vmul.f32 %v72, %v80
    %vm82 = vcmp.eq.f32.partialorder %v72, inf
    %v83 = vsel %vm82, %v72, %v81
    %vm84 = vcmp.eq.f32.partialorder %v72, 0.0
    %v85 = vand.u32 %v72, 2147483648
    %v86 = vsel %vm84, %v85, %v83
    %v87 = vld [vmem:[%s1] sm:$0x1]
    %v88 = vadd.f32 %v79, 1e-06
    %v89 = vadd.f32 %v86, 1e-06
    %v90 = vrcp.pop %v88
    %v91 = vmul.f32 %v61, %v90
    %v92 = vrcp.pop %v89
    %v93 = vmul.f32 %v62, %v92
    %v95 = vlaneseq
    %v96 = vshrl.u32 %v95, 7
    %v97 = vsub.s32 0, %v96
    %v98 = vrot.slane %v87, %v97
    %v100 = vmul.f32 %v98, %v91
    %v101 = vmul.f32 %v98, %v93
    %v102 = vld [vmem:[%s2] sm:$0x1]
    %v104 = vlaneseq
    %v105 = vshrl.u32 %v104, 7
    %v106 = vsub.s32 0, %v105
    %v107 = vrot.slane %v102, %v106
    %v109 = vadd.f32 %v100, %v107
    %v110 = vadd.f32 %v101, %v107
    %v111 = vld [vmem:[#allocation5] sm:$0xff]
    %v112 = vld [vmem:[#allocation5 + $0x8] sm:$0xff]
    %v113 = vld [vmem:[#allocation5 + $0x10] sm:$0xff]
    %v114 = vld [vmem:[#allocation5 + $0x18] sm:$0xff]
    %v115 = vld [vmem:[%s4] sm:$0x1]
    %v117 = vlaneseq
    %v118 = vshrl.u32 %v117, 7
    %v119 = vsub.s32 0, %v118
    %v120 = vrot.slane %v115, %v119
    %v123 = vsel %vm51, %v109, 0
    %v126 = vsel %vm51, %v110, 0
    %128 = vmatprep.subr.mxu0 0.0
    %129 = vmatpush1.msra.mxu0 %v111
    %130 = vmatprep.subr.mxu0 0.0
    %131 = vmatpush1.msra.mxu0 %v112
    %132 = vmatprep.subr.mxu0 0.0
    %133 = vmatpush1.msra.mxu0 %v113
    %134 = vmatprep.subr.mxu0 0.0
    %135 = vmatpush1.msra.mxu0 %v114
    %136 = vmatprep.subr.mxu0 0.0
    %137 = vmatpush1.msra.mxu0 0.0
    %138 = vmatprep.subr.mxu0 0.0
    %139 = vmatpush1.msra.mxu0 0.0
    %140 = vmatprep.subr.mxu0 0.0
    %141 = vmatpush1.msra.mxu0 0.0
    %142 = vmatprep.subr.mxu0 0.0
    %143 = vmatpush1.msra.mxu0 0.0
    %144 = vmatprep.subr.mxu0 0.0
    %145 = vmatpush1.msra.mxu0 0.0
    %146 = vmatprep.subr.mxu0 0.0
    %147 = vmatpush1.msra.mxu0 0.0
    %148 = vmatprep.subr.mxu0 0.0
    %149 = vmatpush1.msra.mxu0 0.0
    %150 = vmatprep.subr.mxu0 0.0
    %151 = vmatpush1.msra.mxu0 0.0
    %152 = vmatprep.subr.mxu0 0.0
    %153 = vmatpush1.msra.mxu0 0.0
    %154 = vmatprep.subr.mxu0 0.0
    %155 = vmatpush1.msra.mxu0 0.0
    %156 = vmatprep.subr.mxu0 0.0
    %157 = vmatpush1.msra.mxu0 0.0
    %158 = vmatprep.subr.mxu0 0.0
    %159 = vmatpush1.msra.mxu0 0.0
    %160 = vmatprep.subr.mxu0 0.0
    %161 = vmatpush1.msra.mxu0 0.0
    %162 = vmatprep.subr.mxu0 0.0
    %163 = vmatpush1.msra.mxu0 0.0
    %164 = vmatprep.subr.mxu0 0.0
    %165 = vmatpush1.msra.mxu0 0.0
    %166 = vmatprep.subr.mxu0 0.0
    %167 = vmatpush1.msra.mxu0 0.0
    %168 = vmatprep.subr.mxu0 0.0
    %169 = vmatpush1.msra.mxu0 0.0
    %170 = vmatprep.subr.mxu0 0.0
    %171 = vmatpush1.msra.mxu0 0.0
    %172 = vmatprep.subr.mxu0 0.0
    %173 = vmatpush1.msra.mxu0 0.0
    %174 = vmatprep.subr.mxu0 0.0
    %175 = vmatpush1.msra.mxu0 0.0
    %176 = vmatprep.subr.mxu0 0.0
    %177 = vmatpush1.msra.mxu0 0.0
    %178 = vmatprep.subr.mxu0 0.0
    %179 = vmatpush1.msra.mxu0 0.0
    %180 = vmatprep.subr.mxu0 0.0
    %181 = vmatpush1.msra.mxu0 0.0
    %182 = vmatprep.subr.mxu0 0.0
    %183 = vmatpush1.msra.mxu0 0.0
    %184 = vmatprep.subr.mxu0 0.0
    %185 = vmatpush1.msra.mxu0 0.0
    %186 = vmatprep.subr.mxu0 0.0
    %187 = vmatpush1.msra.mxu0 0.0
    %188 = vmatprep.subr.mxu0 0.0
    %189 = vmatpush1.msra.mxu0 0.0
    %190 = vmatprep.subr.mxu0 0.0
    %191 = vmatpush1.msra.mxu0 0.0
    %192 = vmatprep.mubr.f32.mxu0 0.0
    %193 = vmatmul.mubr.f32.gmra.mrb[0].mxu0 %v123
    %v194 = vpop.f32.mrb[0].mxu0
    %v195 = vadd.f32 %v120, %v194
    %v196 = vpop.f32.mrb[0].mxu0
    %197 = vmatprep.mubr.f32.mxu0 0.0
    %198 = vmatmul.mubr.f32.gmra.mrb[0].mxu0 %v126
    %v199 = vpop.f32.mrb[0].mxu0
    %v200 = vadd.f32 %v120, %v199
    %v201 = vpop.f32.mrb[0].mxu0
    %202 = vdwg.mxu0
    %v203 = vadd.f32 %v195, %v195
    %v204 = vadd.f32 %v200, %v200
    %205 = vst.msk [vmem:[#allocation7] sm:$0xff] %vm51, %v203
    %206 = vst.msk [vmem:[#allocation7 + $0x8] sm:$0xff] %vm51, %v204
    // Predicated region
    $region30: #{tpu_custom_call.1} parent=1 // pred_check
      _
    $region31: #{tpu_custom_call.1} parent=1 // pred_check_branch
      %208 = sbr.rel (0) target = $region33
    $region32: #{tpu_custom_call.1} parent=1 // pred_region
      %s210 = ssub.s32 256, 256
      %211 = vsyncadd [#allocation4], %s210
      %s212 = sshll.u32 [#allocation7], 4
      %s213 = int_to_ptr.vmem [resolvable:$true] %s212
      %218 = dma.vmem_to_hbm [thread:$0]  %s213, 256, %s5, [#allocation4], 128, 128, 8
    $region33: #{tpu_custom_call.1} parent=1 // pred_fallthru
      _
    // Predicated region
    $region34: #{tpu_custom_call.1} parent=1 // pred_check
      _
    $region35: #{tpu_custom_call.1} parent=1 // pred_check_branch
      %220 = sbr.rel (0) target = $region37
    $region36: #{tpu_custom_call.1} parent=1 // pred_region
      %221 = dma.done [#allocation4], 256
    $region37: #{tpu_custom_call.1} parent=1 // pred_fallthru
      _
    %222 = vsyncpa [#allocation3], 1
    %223 = vsyncpa [#allocation6], 1
    %224 = vsyncpa [#allocation4], 1

</llo_original>
